<compile_context>
chip_gen: v6e
topology: v6e:2x2x1
jax: 0.10.0
libtpu: 0.0.40
codegen_flags: <defaults>
</compile_context>

<pallas_src>
import functools

import jax
import jax.numpy as jnp
from jax.experimental import pallas as pl
from jax.experimental.pallas import tpu as pltpu


def _mask_weight(W, causal_temporal_map, diff):
    """Apply the module's causal mask to the raw Linear weight (plain JAX glue)."""
    dim = W.shape[0]
    if causal_temporal_map == "lower_triangle":
        return jnp.triu(W, k=1)
    if causal_temporal_map == "off_diagonal":
        rows = jax.lax.broadcasted_iota(jnp.int32, (dim, dim), 0)
        cols = jax.lax.broadcasted_iota(jnp.int32, (dim, dim), 1)
        mask = ((rows - cols) == diff).astype(W.dtype)   # mask[i, i - diff] = 1
        return W * mask.T                                # matches `weight * mask.T`
    return W


def _choose_batch_block(B, N, T, itemsize, vmem_budget_bytes=8 << 20):
    """Pick how many batch elements to pack per grid step.

    Packing amortizes the ~0.35 us per-grid-step overhead and feeds the MXU
    with (Bb*N)-row matmuls instead of N-row ones; the budget keeps the
    double-buffered blocks plus the f32 intermediates comfortably inside every
    generation's scoped VMEM limit (v7x only has 64 MiB per TensorCore).
    """
    per_b = (2 * 2 * N * T * itemsize      # x & out blocks, double buffered
             + 4 * N * T * 4               # f32 LN / matmul intermediates
             + T * T * 4)                  # per-element (T, T) Gram
    bb = int(max(1, min(B, vmem_budget_bytes // max(per_b, 1))))
    if B >= 2:
        bb = max(1, min(bb, B // 2))       # >= 2 grid steps -> both v7x TCs busy
    while B % bb:                          # keep every grid step full
        bb -= 1
    return bb


def _ctma_kernel(x_ref, e_ref, wT_ref, gamma_ref, beta_ref, o_ref, *,
                 eps, matmul_dtype):
    """One grid step = Bb packed batch elements.

    x_ref:     (Bb, N, T)  input slab
    e_ref:     (N, T)      shared positional/embedding term
    wT_ref:    (T, T)      pre-masked, pre-scaled W_Q_W_KT weight (transposed)
    gamma_ref: (1, T)      LayerNorm scale (f32)
    beta_ref:  (1, T)      LayerNorm shift (f32)
    o_ref:     (Bb, N, T)  output slab
    """
    bb, n, t = x_ref.shape

    # ---- LayerNorm(x + e) in f32 (biased variance, PyTorch eps semantics) ----
    xe = x_ref[...].astype(jnp.float32) + e_ref[...][None].astype(jnp.float32)
    mean = jnp.mean(xe, axis=-1, keepdims=True)
    var = jnp.mean(jnp.square(xe - mean), axis=-1, keepdims=True)
    xe_n = (xe - mean) * jax.lax.rsqrt(var + eps)
    xe_n = xe_n * gamma_ref[...] + beta_ref[...]                      # (Bb, N, T)

    xm = xe_n.astype(matmul_dtype)          # bf16 MXU operands, f32 accumulation

    # ---- q = x_e @ (scale * W_masked.T) as one (Bb*N, T) @ (T, T) matmul ----
    xq = jnp.dot(xm.reshape(bb * n, t), wT_ref[...],
                 preferred_element_type=jnp.float32).reshape(bb, n, t)

    # ---- Gram[b] = x_e[b]^T @ x_e[b]  (contract N; no explicit transpose) ----
    gram = jnp.einsum("bnt,bns->bts", xm, xm,
                      preferred_element_type=jnp.float32)             # (Bb, T, T)

    # ---- out[b] = q[b] @ Gram[b]   ( == (q @ x_e^T) @ x_e ) ----
    out = jnp.einsum("bnt,bts->bns",
                     xq.astype(matmul_dtype), gram.astype(matmul_dtype),
                     preferred_element_type=jnp.float32)              # (Bb, N, T)

    o_ref[...] = out.astype(o_ref.dtype)


def causal_temporal_map_attention(x, e, W, gamma, beta, *,
                                  causal_temporal_map="lower_triangle",
                                  diff=20,
                                  matmul_dtype=jnp.bfloat16,
                                  batch_block=None,
                                  vmem_limit_bytes=32 * 1024 * 1024):
    """Pallas forward of Causal_Temporal_Map_Attention (default config).

    x: (B, N, T), e: (N, T) (broadcast over batch), W: (T, T) = W_Q_W_KT.weight,
    gamma/beta: (T,) LayerNorm affine.  Returns (B, N, T) in x.dtype.
    """
    B, N, T = x.shape
    scale = T ** (-0.5)
    eps = 1e-5

    # Fold the causal mask and the 1/sqrt(dim) scale into the weight once,
    # outside the kernel.  Linear(x) = x @ W.T, so the kernel gets W_masked.T.
    wT = (_mask_weight(W, causal_temporal_map, diff).T * scale).astype(matmul_dtype)
    gamma2 = gamma.reshape(1, T).astype(jnp.float32)
    beta2 = beta.reshape(1, T).astype(jnp.float32)

    Bb = batch_block or _choose_batch_block(B, N, T, jnp.dtype(x.dtype).itemsize)
    assert B % Bb == 0, (B, Bb)

    kernel = functools.partial(_ctma_kernel, eps=eps, matmul_dtype=matmul_dtype)

    return pl.pallas_call(
        kernel,
        out_shape=jax.ShapeDtypeStruct((B, N, T), x.dtype),
        grid_spec=pltpu.PrefetchScalarGridSpec(
            num_scalar_prefetch=0,
            grid=(B // Bb,),
            in_specs=[
                pl.BlockSpec((Bb, N, T), lambda b: (b, 0, 0)),   # x (packed batches)
                pl.BlockSpec((N, T), lambda b: (0, 0)),          # e (shared)
                pl.BlockSpec((T, T), lambda b: (0, 0)),          # scale * W_masked.T
                pl.BlockSpec((1, T), lambda b: (0, 0)),          # gamma
                pl.BlockSpec((1, T), lambda b: (0, 0)),          # beta
            ],
            out_specs=pl.BlockSpec((Bb, N, T), lambda b: (b, 0, 0)),
        ),
        compiler_params=pltpu.CompilerParams(
            dimension_semantics=("parallel",),
            vmem_limit_bytes=vmem_limit_bytes),
    )(x, e, wT, gamma2, beta2)


# ----------------------------- references ----------------------------------


def _reference(x, e, W, gamma, beta, *, causal_temporal_map="lower_triangle",
               diff=20):
    """Exact f32 reference mirroring the PyTorch forward (default config)."""
    dim = x.shape[-1]
    scale = dim ** (-0.5)
    hp = jax.lax.Precision.HIGHEST
    W_masked = _mask_weight(W, causal_temporal_map, diff)
    xe = x + e[None]
    mean = jnp.mean(xe, axis=-1, keepdims=True)
    var = jnp.mean(jnp.square(xe - mean), axis=-1, keepdims=True)
    xe_n = (xe - mean) * jax.lax.rsqrt(var + 1e-5) * gamma + beta
    v = xe_n
    xq = jnp.einsum("bnt,kt->bnk", xe_n, W_masked, precision=hp) * scale
    logits = jnp.einsum("bnt,bmt->bnm", xq, xe_n, precision=hp)
    return jnp.einsum("bnm,bmt->bnt", logits, v, precision=hp)


def _reference_mxu(x, e, W, gamma, beta, *, causal_temporal_map="lower_triangle",
                   diff=20, matmul_dtype=jnp.bfloat16):
    """Reference with the kernel's exact numerics (same Gram association, same
    operand-dtype casts, f32 accumulation) for a tight correctness check that
    is independent of bf16 operand rounding."""
    dim = x.shape[-1]
    scale = dim ** (-0.5)
    wT = (_mask_weight(W, causal_temporal_map, diff).T * scale).astype(matmul_dtype)
    xe = x + e[None]
    mean = jnp.mean(xe, axis=-1, keepdims=True)
    var = jnp.mean(jnp.square(xe - mean), axis=-1, keepdims=True)
    xe_n = (xe - mean) * jax.lax.rsqrt(var + 1e-5) * gamma + beta
    xm = xe_n.astype(matmul_dtype)
    xq = jnp.einsum("bnt,tk->bnk", xm, wT, preferred_element_type=jnp.float32)
    gram = jnp.einsum("bnt,bns->bts", xm, xm, preferred_element_type=jnp.float32)
    return jnp.einsum("bnt,bts->bns", xq.astype(matmul_dtype),
                      gram.astype(matmul_dtype),
                      preferred_element_type=jnp.float32)


if __name__ == "__main__":
    B, N, dim = 8, 16, 32   # batch, neurons (sequence), feature/time dim

    key = jax.random.PRNGKey(0)
    kx, ke, kw, kg, kb = jax.random.split(key, 5)

    x = jax.random.normal(kx, (B, N, dim), dtype=jnp.float32)
    e = jax.random.normal(ke, (N, dim), dtype=jnp.float32)
    W = jax.random.normal(kw, (dim, dim), dtype=jnp.float32) * 0.1          # W_Q_W_KT.weight
    gamma = 1.0 + 0.05 * jax.random.normal(kg, (dim,), dtype=jnp.float32)   # LayerNorm.weight
    beta = 0.05 * jax.random.normal(kb, (dim,), dtype=jnp.float32)          # LayerNorm.bias

    # Default path: lower-triangle causal mask, bf16 MXU operands, packed batches.
    out = jax.block_until_ready(causal_temporal_map_attention(x, e, W, gamma, beta))
    assert out.shape == (B, N, dim)

    # (a) tight check vs. a reference with identical numerics (bf16 operands,
    #     f32 accumulation, Gram association);
    # (b) conservative check vs. exact f32 math (bf16 operand rounding is at
    #     the ~1e-2 level for these magnitudes).
    ref_mxu = _reference_mxu(x, e, W, gamma, beta)
    ref = _reference(x, e, W, gamma, beta)
    assert jnp.allclose(out, ref_mxu, rtol=2e-2, atol=2e-2), "mismatch vs MXU-precision reference"
    assert jnp.allclose(out, ref, rtol=1e-1, atol=1e-1), "mismatch vs exact f32 reference"

    # 'off_diagonal' weight-masking branch (previously untested).
    out_od = jax.block_until_ready(causal_temporal_map_attention(
        x, e, W, gamma, beta, causal_temporal_map="off_diagonal", diff=20))
    ref_od = _reference_mxu(x, e, W, gamma, beta,
                            causal_temporal_map="off_diagonal", diff=20)
    assert jnp.allclose(out_od, ref_od, rtol=2e-2, atol=2e-2), "off_diagonal mismatch"

    print("KERNEL_OK")
</pallas_src>

<mosaic_0001>
module attributes {stable_mosaic.version = 11 : i64} {
  func.func @_ctma_kernel(%arg0: i32, %arg1: memref<4x16x32xf32, #tpu.memory_space<vmem>>, %arg2: memref<16x32xf32, #tpu.memory_space<vmem>>, %arg3: memref<32x32xbf16, #tpu.memory_space<vmem>>, %arg4: memref<1x32xf32, #tpu.memory_space<vmem>>, %arg5: memref<1x32xf32, #tpu.memory_space<vmem>>, %arg6: memref<4x16x32xf32, #tpu.memory_space<vmem>>) attributes {dimension_semantics = [#tpu.dimension_semantics<parallel>], iteration_bounds = array<i64: 2>, scalar_prefetch = 0 : i64, scratch_operands = 0 : i64, tpu.core_type = #tpu.core_type<tc>, window_params = [{transform_indices = @transform_0, window_bounds = array<i64: 4, 16, 32>}, {pipeline_mode = #tpu.pipeline_mode<synchronous>, transform_indices = @transform_1, window_bounds = array<i64: 16, 32>}, {pipeline_mode = #tpu.pipeline_mode<synchronous>, transform_indices = @transform_2, window_bounds = array<i64: 32, 32>}, {pipeline_mode = #tpu.pipeline_mode<synchronous>, transform_indices = @transform_3, window_bounds = array<i64: 1, 32>}, {pipeline_mode = #tpu.pipeline_mode<synchronous>, transform_indices = @transform_4, window_bounds = array<i64: 1, 32>}, {transform_indices = @transform_5, window_bounds = array<i64: 4, 16, 32>}]} {
    %c0 = arith.constant 0 : index
    %c0_0 = arith.constant 0 : index
    %c0_1 = arith.constant 0 : index
    %0 = vector.load %arg1[%c0, %c0_0, %c0_1] : memref<4x16x32xf32, #tpu.memory_space<vmem>>, vector<4x16x32xf32>
    %c0_2 = arith.constant 0 : index
    %c0_3 = arith.constant 0 : index
    %1 = vector.load %arg2[%c0_2, %c0_3] : memref<16x32xf32, #tpu.memory_space<vmem>>, vector<16x32xf32>
    %2 = vector.shape_cast %1 : vector<16x32xf32> to vector<1x16x32xf32>
    %3 = vector.broadcast %2 : vector<1x16x32xf32> to vector<4x16x32xf32>
    %4 = arith.addf %0, %3 : vector<4x16x32xf32>
    %cst = arith.constant dense<0.000000e+00> : vector<4x16xf32>
    %5 = vector.multi_reduction <add>, %4, %cst [2] : vector<4x16x32xf32> to vector<4x16xf32>
    %6 = vector.shape_cast %5 : vector<4x16xf32> to vector<4x16x1xf32>
    %cst_4 = arith.constant 3.200000e+01 : f32
    %7 = vector.broadcast %cst_4 : f32 to vector<4x16x1xf32>
    %8 = arith.divf %6, %7 : vector<4x16x1xf32>
    %9 = vector.broadcast %8 : vector<4x16x1xf32> to vector<4x16x32xf32>
    %10 = arith.subf %4, %9 : vector<4x16x32xf32>
    %11 = arith.mulf %10, %10 : vector<4x16x32xf32>
    %cst_5 = arith.constant dense<0.000000e+00> : vector<4x16xf32>
    %12 = vector.multi_reduction <add>, %11, %cst_5 [2] : vector<4x16x32xf32> to vector<4x16xf32>
    %13 = vector.shape_cast %12 : vector<4x16xf32> to vector<4x16x1xf32>
    %cst_6 = arith.constant 3.200000e+01 : f32
    %14 = vector.broadcast %cst_6 : f32 to vector<4x16x1xf32>
    %15 = arith.divf %13, %14 : vector<4x16x1xf32>
    %16 = vector.broadcast %8 : vector<4x16x1xf32> to vector<4x16x32xf32>
    %17 = arith.subf %4, %16 : vector<4x16x32xf32>
    %cst_7 = arith.constant 9.99999974E-6 : f32
    %18 = vector.broadcast %cst_7 : f32 to vector<4x16x1xf32>
    %19 = arith.addf %15, %18 : vector<4x16x1xf32>
    %20 = math.rsqrt %19 : vector<4x16x1xf32>
    %21 = vector.broadcast %20 : vector<4x16x1xf32> to vector<4x16x32xf32>
    %22 = arith.mulf %17, %21 : vector<4x16x32xf32>
    %c0_8 = arith.constant 0 : index
    %c0_9 = arith.constant 0 : index
    %23 = vector.load %arg4[%c0_8, %c0_9] : memref<1x32xf32, #tpu.memory_space<vmem>>, vector<1x32xf32>
    %24 = vector.shape_cast %23 : vector<1x32xf32> to vector<1x1x32xf32>
    %25 = vector.broadcast %24 : vector<1x1x32xf32> to vector<4x16x32xf32>
    %26 = arith.mulf %22, %25 : vector<4x16x32xf32>
    %c0_10 = arith.constant 0 : index
    %c0_11 = arith.constant 0 : index
    %27 = vector.load %arg5[%c0_10, %c0_11] : memref<1x32xf32, #tpu.memory_space<vmem>>, vector<1x32xf32>
    %28 = vector.shape_cast %27 : vector<1x32xf32> to vector<1x1x32xf32>
    %29 = vector.broadcast %28 : vector<1x1x32xf32> to vector<4x16x32xf32>
    %30 = arith.addf %26, %29 : vector<4x16x32xf32>
    %31 = arith.truncf %30 : vector<4x16x32xf32> to vector<4x16x32xbf16>
    %32 = vector.shape_cast %31 : vector<4x16x32xbf16> to vector<64x32xbf16>
    %c0_12 = arith.constant 0 : index
    %c0_13 = arith.constant 0 : index
    %33 = vector.load %arg3[%c0_12, %c0_13] : memref<32x32xbf16, #tpu.memory_space<vmem>>, vector<32x32xbf16>
    %cst_14 = arith.constant dense<0.000000e+00> : vector<64x32xf32>
    %34 = tpu.matmul %32, %33, %cst_14 {dimension_numbers = #tpu.dot_dimension_numbers<[1], [0], [0], [1], [0, 0, 1, 1], [], []>} : vector<64x32xbf16>, vector<32x32xbf16>, vector<64x32xf32> -> vector<64x32xf32>
    %35 = vector.shape_cast %34 : vector<64x32xf32> to vector<4x16x32xf32>
    "tpu.trace_start"() <{level = 10 : i32, message = "bnt,bns->bts"}> : () -> ()
    %cst_15 = arith.constant dense<0.000000e+00> : vector<4x32x32xf32>
    %36 = tpu.matmul %31, %31, %cst_15 {dimension_numbers = #tpu.dot_dimension_numbers<[1], [1], [2], [2], [0, 0, 0, 2, 1, 2], [0], [0]>} : vector<4x16x32xbf16>, vector<4x16x32xbf16>, vector<4x32x32xf32> -> vector<4x32x32xf32>
    "tpu.trace_stop"() : () -> ()
    %37 = arith.truncf %35 : vector<4x16x32xf32> to vector<4x16x32xbf16>
    %38 = arith.truncf %36 : vector<4x32x32xf32> to vector<4x32x32xbf16>
    "tpu.trace_start"() <{level = 10 : i32, message = "bnt,bts->bns"}> : () -> ()
    %cst_16 = arith.constant dense<0.000000e+00> : vector<4x16x32xf32>
    %39 = tpu.matmul %37, %38, %cst_16 {dimension_numbers = #tpu.dot_dimension_numbers<[2], [1], [1], [2], [0, 0, 0, 1, 1, 2], [0], [0]>} : vector<4x16x32xbf16>, vector<4x32x32xbf16>, vector<4x16x32xf32> -> vector<4x16x32xf32>
    "tpu.trace_stop"() : () -> ()
    %c0_17 = arith.constant 0 : index
    %c0_18 = arith.constant 0 : index
    %c0_19 = arith.constant 0 : index
    %40 = vector.load %arg6[%c0_17, %c0_18, %c0_19] : memref<4x16x32xf32, #tpu.memory_space<vmem>>, vector<4x16x32xf32>
    tpu.vector_store %arg6[%c0_17, %c0_18, %c0_19], %39 {strides = array<i32>} : memref<4x16x32xf32, #tpu.memory_space<vmem>>, vector<4x16x32xf32>,
    return
  }
  func.func @transform_0(%arg0: i32) -> (i32, i32, i32) {
    %c0_i32 = arith.constant 0 : i32
    %c0_i32_0 = arith.constant 0 : i32
    %c0_i32_1 = arith.constant 0 : i32
    return %arg0, %c0_i32, %c0_i32_0 : i32, i32, i32
  }
  func.func @transform_1(%arg0: i32) -> (i32, i32) {
    %c0_i32 = arith.constant 0 : i32
    %c0_i32_0 = arith.constant 0 : i32
    %c0_i32_1 = arith.constant 0 : i32
    return %c0_i32, %c0_i32_0 : i32, i32
  }
  func.func @transform_2(%arg0: i32) -> (i32, i32) {
    %c0_i32 = arith.constant 0 : i32
    %c0_i32_0 = arith.constant 0 : i32
    %c0_i32_1 = arith.constant 0 : i32
    return %c0_i32, %c0_i32_0 : i32, i32
  }
  func.func @transform_3(%arg0: i32) -> (i32, i32) {
    %c0_i32 = arith.constant 0 : i32
    %c0_i32_0 = arith.constant 0 : i32
    %c0_i32_1 = arith.constant 0 : i32
    return %c0_i32, %c0_i32_0 : i32, i32
  }
  func.func @transform_4(%arg0: i32) -> (i32, i32) {
    %c0_i32 = arith.constant 0 : i32
    %c0_i32_0 = arith.constant 0 : i32
    %c0_i32_1 = arith.constant 0 : i32
    return %c0_i32, %c0_i32_0 : i32, i32
  }
  func.func @transform_5(%arg0: i32) -> (i32, i32, i32) {
    %c0_i32 = arith.constant 0 : i32
    %c0_i32_0 = arith.constant 0 : i32
    %c0_i32_1 = arith.constant 0 : i32
    return %arg0, %c0_i32, %c0_i32_0 : i32, i32, i32
  }
}

</mosaic_0001>

<llo_original>
// kernel: tpu_custom_call.1
$region0: #{tpu_custom_call.1}
  #allocation0 [shape = 'u32[]', space=smem, size = 0x4, offset = 0x4, fixed_abs, tag = 'smem constant byte address 0x4 - core index']
  #allocation1 [shape = 'u32[144,128]{1,0:T(1,128)}', space=vmem, size = 0x12000, scoped, tag = 'internal scratch']
  %s0 = inlined_call_operand.hbm [shape: f32[8,16,32], index: 0, kind: input, shape index: {}]
  %s1 = inlined_call_operand.hbm [shape: f32[16,32], index: 1, kind: input, shape index: {}]
  %s2 = inlined_call_operand.hbm [shape: bf16[32,32], index: 2, kind: input, shape index: {}]
  %s3 = inlined_call_operand.vmem [shape: f32[1,32], index: 3, kind: input, shape index: {}]
  %s4 = inlined_call_operand.vmem [shape: f32[1,32], index: 4, kind: input, shape index: {}]
  %s5 = inlined_call_operand.hbm [shape: f32[8,16,32], index: 5, kind: output, shape index: {}]
  %s6 = sld [smem:[#allocation0]]
  $region65: #{tpu_custom_call.1} parent=0
    _
  %s8 = ssub.s32 1, %s6
  %s9 = scalar_select 0, %s8, %s6
  $region1: #{tpu_custom_call.1} parent=0
    #allocation2 [shape = 'u8[65536]{0}', space=vmem, size = 0x10000, scoped, tag = 'input window, operand 0']
    #allocation3 [shape = 's32[2]{0}', space=sflag, size = 0x8, scoped, tag = 'scoped memory for tpu_custom_call.1']
    #allocation4 [shape = 's32[2]{0}', space=sflag, size = 0x8, scoped, tag = 'scoped memory for tpu_custom_call.1']
    #allocation5 [shape = 'u8[8192]{0}', space=vmem, size = 0x2000, scoped, tag = 'input window, operand 1, single buffered']
    #allocation6 [shape = 's32[1]{0}', space=sflag, size = 0x4, scoped, tag = 'scoped memory for tpu_custom_call.1']
    #allocation7 [shape = 'u8[8192]{0}', space=vmem, size = 0x2000, scoped, tag = 'input window, operand 2, single buffered']
    #allocation8 [shape = 'u8[65536]{0}', space=vmem, size = 0x10000, scoped, tag = 'output window, operand 0']
    %10 = vsyncpa [#allocation3], 0
    %s11 = scalar_lea.sflag [#allocation3], 1
    %12 = vsyncpa %s11, 0
    %13 = vsyncpa [#allocation6], 0
    %14 = vsyncpa [#allocation4], 0
    %s15 = scalar_lea.sflag [#allocation4], 1
    %16 = vsyncpa %s15, 0
    loop: start=0, step=1, limit=4
    $region2: #{tpu_custom_call.1} parent=1 // loop_pre_header
      _
    $region3: #{tpu_custom_call.1} parent=1 // loop_header
      %s18 = sphi 0, %s22
      %p19 = scmp.ge.s32.totalorder %s18, 4
      %s28 = sphi 0, %s30
      %s31 = sphi 0, %s28
      %s32 = sphi 0, %s31
      %s48 = sphi 0, %s32
      %s52 = sphi 0, %s52
      %s54 = sphi 0, %s52
      %s55 = sphi 0, %s54
      %s69 = sphi 0, %s55
      %s73 = sphi 0, %s73
      %s75 = sphi 0, %s73
      %s76 = sphi 0, %s75
      %s90 = sphi 0, %s76
      %s94 = sphi 0, %s94
      %s96 = sphi 0, %s94
      %s97 = sphi 0, %s96
      %s111 = sphi 0, %s97
      %s115 = sphi 0, %s115
      %s117 = sphi 0, %s115
      %s118 = sphi 0, %s117
      %s132 = sphi 0, %s118
      %s138 = sphi 0, %s140
      %s141 = sphi 0, %s138
      %s142 = sphi 0, %s141
      %s158 = sphi 0, %s142
    $region4: #{tpu_custom_call.1} parent=1 // loop_header_branch
      %21 = sbr.rel (%p19) target = $region8
    $region5: #{tpu_custom_call.1} parent=1 // loop_body
      %s23 = ssub.s32 %s18, 1
      %s24 = ssub.s32 %s18, 2
      %s25 = sadd.s32 %s18, 1
      %s26 = ssub.s32 %s18, %s25
      %p27 = scmp.eq.s32.totalorder %s26, 0
      %s29 = sadd.s32 %s28, 1
      %s30 = scalar_select %p27, %s28, %s29
      %p33 = pneg %p27
      %p34 = scmp.eq.s32.totalorder %s18, 1
      %p35 = por %p33, %p34
      %p36 = scmp.ne.s32.totalorder %s28, %s31
      %p37 = scmp.eq.s32.totalorder %s18, 0
      %p38 = por %p36, %p37
      %p39 = scmp.ne.s32.totalorder %s28, %s31
      %p40 = scmp.eq.s32.totalorder %s23, 1
      %p41 = por %p39, %p40
      %p42 = scmp.ne.s32.totalorder %s31, %s32
      %p43 = scmp.eq.s32.totalorder %s23, 0
      %p44 = por %p42, %p43
      %p45 = scmp.ne.s32.totalorder %s31, %s32
      %p46 = scmp.eq.s32.totalorder %s24, 1
      %p47 = por %p45, %p46
      %p49 = scmp.ne.s32.totalorder %s32, %s48
      %p50 = scmp.eq.s32.totalorder %s24, 0
      %p51 = por %p49, %p50
      %s53 = sadd.s32 %s52, 1
      %p56 = scmp.eq.s32.totalorder %s18, 1
      %p57 = scmp.ne.s32.totalorder %s52, %s54
      %p58 = scmp.eq.s32.totalorder %s18, 0
      %p59 = por %p57, %p58
      %p60 = scmp.ne.s32.totalorder %s52, %s54
      %p61 = scmp.eq.s32.totalorder %s23, 1
      %p62 = por %p60, %p61
      %p63 = scmp.ne.s32.totalorder %s54, %s55
      %p64 = scmp.eq.s32.totalorder %s23, 0
      %p65 = por %p63, %p64
      %p66 = scmp.ne.s32.totalorder %s54, %s55
      %p67 = scmp.eq.s32.totalorder %s24, 1
      %p68 = por %p66, %p67
      %p70 = scmp.ne.s32.totalorder %s55, %s69
      %p71 = scmp.eq.s32.totalorder %s24, 0
      %p72 = por %p70, %p71
      %s74 = sadd.s32 %s73, 1
      %p77 = scmp.eq.s32.totalorder %s18, 1
      %p78 = scmp.ne.s32.totalorder %s73, %s75
      %p79 = scmp.eq.s32.totalorder %s18, 0
      %p80 = por %p78, %p79
      %p81 = scmp.ne.s32.totalorder %s73, %s75
      %p82 = scmp.eq.s32.totalorder %s23, 1
      %p83 = por %p81, %p82
      %p84 = scmp.ne.s32.totalorder %s75, %s76
      %p85 = scmp.eq.s32.totalorder %s23, 0
      %p86 = por %p84, %p85
      %p87 = scmp.ne.s32.totalorder %s75, %s76
      %p88 = scmp.eq.s32.totalorder %s24, 1
      %p89 = por %p87, %p88
      %p91 = scmp.ne.s32.totalorder %s76, %s90
      %p92 = scmp.eq.s32.totalorder %s24, 0
      %p93 = por %p91, %p92
      %s95 = sadd.s32 %s94, 1
      %p98 = scmp.eq.s32.totalorder %s18, 1
      %p99 = scmp.ne.s32.totalorder %s94, %s96
      %p100 = scmp.eq.s32.totalorder %s18, 0
      %p101 = por %p99, %p100
      %p102 = scmp.ne.s32.totalorder %s94, %s96
      %p103 = scmp.eq.s32.totalorder %s23, 1
      %p104 = por %p102, %p103
      %p105 = scmp.ne.s32.totalorder %s96, %s97
      %p106 = scmp.eq.s32.totalorder %s23, 0
      %p107 = por %p105, %p106
      %p108 = scmp.ne.s32.totalorder %s96, %s97
      %p109 = scmp.eq.s32.totalorder %s24, 1
      %p110 = por %p108, %p109
      %p112 = scmp.ne.s32.totalorder %s97, %s111
      %p113 = scmp.eq.s32.totalorder %s24, 0
      %p114 = por %p112, %p113
      %s116 = sadd.s32 %s115, 1
      %p119 = scmp.eq.s32.totalorder %s18, 1
      %p120 = scmp.ne.s32.totalorder %s115, %s117
      %p121 = scmp.eq.s32.totalorder %s18, 0
      %p122 = por %p120, %p121
      %p123 = scmp.ne.s32.totalorder %s115, %s117
      %p124 = scmp.eq.s32.totalorder %s23, 1
      %p125 = por %p123, %p124
      %p126 = scmp.ne.s32.totalorder %s117, %s118
      %p127 = scmp.eq.s32.totalorder %s23, 0
      %p128 = por %p126, %p127
      %p129 = scmp.ne.s32.totalorder %s117, %s118
      %p130 = scmp.eq.s32.totalorder %s24, 1
      %p131 = por %p129, %p130
      %p133 = scmp.ne.s32.totalorder %s118, %s132
      %p134 = scmp.eq.s32.totalorder %s24, 0
      %p135 = por %p133, %p134
      %s136 = ssub.s32 %s18, %s25
      %p137 = scmp.eq.s32.totalorder %s136, 0
      %s139 = sadd.s32 %s138, 1
      %s140 = scalar_select %p137, %s138, %s139
      %p143 = pneg %p137
      %p144 = scmp.eq.s32.totalorder %s18, 1
      %p145 = por %p143, %p144
      %p146 = scmp.ne.s32.totalorder %s138, %s141
      %p147 = scmp.eq.s32.totalorder %s18, 0
      %p148 = por %p146, %p147
      %p149 = scmp.ne.s32.totalorder %s138, %s141
      %p150 = scmp.eq.s32.totalorder %s23, 1
      %p151 = por %p149, %p150
      %p152 = scmp.ne.s32.totalorder %s141, %s142
      %p153 = scmp.eq.s32.totalorder %s23, 0
      %p154 = por %p152, %p153
      %p155 = scmp.ne.s32.totalorder %s141, %s142
      %p156 = scmp.eq.s32.totalorder %s24, 1
      %p157 = por %p155, %p156
      %p159 = scmp.ne.s32.totalorder %s142, %s158
      %p160 = scmp.eq.s32.totalorder %s24, 0
      %p161 = por %p159, %p160
      %p162 = scmp.le.s32.totalorder 1, %s18
      %p163 = scmp.lt.s32.totalorder %s18, 3
      %p164 = pnand %p162, %p163
      %p165 = pneg %p164
      // Predicated region
      $region9: #{tpu_custom_call.1} parent=5 // pred_check
        _
      $region10: #{tpu_custom_call.1} parent=5 // pred_check_branch
        %167 = sbr.rel (%p164) target = $region12
      $region11: #{tpu_custom_call.1} parent=5 // pred_region
        %s168 = ssub.s32 %s18, 1
        // Predicated region
        $region13: #{tpu_custom_call.1} parent=11 // pred_check
          %p169 = pneg %p65
        $region14: #{tpu_custom_call.1} parent=11 // pred_check_branch
          %171 = sbr.rel (%p169) target = $region16
        $region15: #{tpu_custom_call.1} parent=11 // pred_region
          %s173 = ssub.s32 256, 256
          %174 = vsyncadd [#allocation6], %s173
          %s175 = sshll.u32 [#allocation5], 4
          %s176 = int_to_ptr.vmem [resolvable:$true] %s175
          %181 = dma.hbm_to_vmem [thread:$0]  %s1, 256, %s176, [#allocation6], 128, 128, 8
        $region16: #{tpu_custom_call.1} parent=11 // pred_fallthru
          _
        // Predicated region
        $region17: #{tpu_custom_call.1} parent=11 // pred_check
          %p182 = pneg %p86
        $region18: #{tpu_custom_call.1} parent=11 // pred_check_branch
          %184 = sbr.rel (%p182) target = $region20
        $region19: #{tpu_custom_call.1} parent=11 // pred_region
          %s186 = ssub.s32 256, 256
          %187 = vsyncadd [#allocation6], %s186
          %s188 = sshll.u32 [#allocation7], 4
          %s189 = int_to_ptr.vmem [resolvable:$true] %s188
          %194 = dma.hbm_to_vmem [thread:$0]  %s2, 256, %s189, [#allocation6], 64, 64, 4
        $region20: #{tpu_custom_call.1} parent=11 // pred_fallthru
          _
        // Predicated region
        $region21: #{tpu_custom_call.1} parent=11 // pred_check
          %p195 = pneg %p107
        $region22: #{tpu_custom_call.1} parent=11 // pred_check_branch
          %197 = sbr.rel (%p195) target = $region24
        $region23: #{tpu_custom_call.1} parent=11 // pred_region
          _
        $region24: #{tpu_custom_call.1} parent=11 // pred_fallthru
          _
        // Predicated region
        $region25: #{tpu_custom_call.1} parent=11 // pred_check
          %p198 = pneg %p128
        $region26: #{tpu_custom_call.1} parent=11 // pred_check_branch
          %200 = sbr.rel (%p198) target = $region28
        $region27: #{tpu_custom_call.1} parent=11 // pred_region
          _
        $region28: #{tpu_custom_call.1} parent=11 // pred_fallthru
          _
      $region12: #{tpu_custom_call.1} parent=5 // pred_fallthru
        _
      %p201 = scmp.lt.s32.totalorder %s18, 2
      // Predicated region
      $region29: #{tpu_custom_call.1} parent=5 // pred_check
        %p202 = pneg %p201
      $region30: #{tpu_custom_call.1} parent=5 // pred_check_branch
        %204 = sbr.rel (%p202) target = $region32
      $region31: #{tpu_custom_call.1} parent=5 // pred_region
        // Predicated region
        $region33: #{tpu_custom_call.1} parent=31 // pred_check
          %p205 = pneg %p38
        $region34: #{tpu_custom_call.1} parent=31 // pred_check_branch
          %207 = sbr.rel (%p205) target = $region36
        $region35: #{tpu_custom_call.1} parent=31 // pred_region
          %s208 = sand.u32 %s28, 1
          %s209 = scalar_lea.sflag [#allocation3], %s208
          %s210 = sand.u32 %s28, 1
          %s211 = smul.addr %s210, 64
          %s212 = scalar_lea.vmem [#allocation2], %s211
          %s213 = smul.u32 4, %s18
          %s215 = ssub.s32 1024, 1024
          %216 = vsyncadd %s209, %s215
          %s217 = smul.addr %s213, 2
          %s218 = smul.addr %s217, 128
          %s219 = scalar_lea.hbm %s0, %s218
          %s220 = sshll.u32 %s212, 4
          %s221 = int_to_ptr.vmem [resolvable:$true] %s220
          %226 = dma.hbm_to_vmem [thread:$0]  %s219, 1024, %s221, %s209, 128, 128, 8
        $region36: #{tpu_custom_call.1} parent=31 // pred_fallthru
          _
      $region32: #{tpu_custom_call.1} parent=5 // pred_fallthru
        _
      %p227 = scmp.le.s32.totalorder 1, %s18
      %p228 = scmp.lt.s32.totalorder %s18, 3
      %p229 = pnand %p227, %p228
      %p230 = pneg %p229
      // Predicated region
      $region37: #{tpu_custom_call.1} parent=5 // pred_check
        _
      $region38: #{tpu_custom_call.1} parent=5 // pred_check_branch
        %232 = sbr.rel (%p229) target = $region40
      $region39: #{tpu_custom_call.1} parent=5 // pred_region
        %s233 = ssub.s32 %s18, 1
        %s234 = sand.u32 %s31, 1
        %s235 = scalar_lea.sflag [#allocation3], %s234
        %s236 = sand.u32 %s31, 1
        %s237 = smul.addr %s236, 64
        %s238 = scalar_lea.vmem [#allocation2], %s237
        // Predicated region
        $region41: #{tpu_custom_call.1} parent=39 // pred_check
          %p239 = pneg %p44
        $region42: #{tpu_custom_call.1} parent=39 // pred_check_branch
          %241 = sbr.rel (%p239) target = $region44
        $region43: #{tpu_custom_call.1} parent=39 // pred_region
          %242 = dma.done %s235, 1024
        $region44: #{tpu_custom_call.1} parent=39 // pred_fallthru
          _
        // Predicated region
        $region45: #{tpu_custom_call.1} parent=39 // pred_check
          %p243 = pneg %p65
        $region46: #{tpu_custom_call.1} parent=39 // pred_check_branch
          %245 = sbr.rel (%p243) target = $region48
        $region47: #{tpu_custom_call.1} parent=39 // pred_region
          %246 = dma.done [#allocation6], 256
        $region48: #{tpu_custom_call.1} parent=39 // pred_fallthru
          _
        // Predicated region
        $region49: #{tpu_custom_call.1} parent=39 // pred_check
          %p247 = pneg %p86
        $region50: #{tpu_custom_call.1} parent=39 // pred_check_branch
          %249 = sbr.rel (%p247) target = $region52
        $region51: #{tpu_custom_call.1} parent=39 // pred_region
          %250 = dma.done [#allocation6], 256
        $region52: #{tpu_custom_call.1} parent=39 // pred_fallthru
          _
        %s251 = sand.u32 %s31, 1
        %s252 = scalar_lea.sflag [#allocation3], %s251
        %s253 = sand.u32 %s31, 1
        %s254 = smul.addr %s253, 64
        %s255 = scalar_lea.vmem [#allocation2], %s254
        %p256 = pneg %p44
        %p257 = pneg %p41
        %p258 = pneg %p65
        %p259 = pneg %p62
        %p260 = pneg %p86
        %p261 = pneg %p83
        %p262 = pneg %p107
        %p263 = pneg %p104
        %p264 = pneg %p128
        %p265 = pneg %p125
        %p266 = pneg %p154
        %p267 = pneg %p151
        %s268 = sand.u32 %s141, 1
        %s269 = scalar_lea.sflag [#allocation4], %s268
        %s270 = sand.u32 %s141, 1
        %s271 = smul.addr %s270, 64
        %s272 = scalar_lea.vmem [#allocation8], %s271
        %s273 = smul.u32 4, %s23
        %s274 = smul.u32 4, %s23
        %v276 = vld [vmem:[%s238] sm:$0xff]
        %v277 = vld [vmem:[%s238 + $0x8] sm:$0xff]
        %v278 = vld [vmem:[%s238 + $0x10] sm:$0xff]
        %v279 = vld [vmem:[%s238 + $0x18] sm:$0xff]
        %v280 = vld [vmem:[%s238 + $0x20] sm:$0xff]
        %v281 = vld [vmem:[%s238 + $0x28] sm:$0xff]
        %v282 = vld [vmem:[%s238 + $0x30] sm:$0xff]
        %v283 = vld [vmem:[%s238 + $0x38] sm:$0xff]
        %v284 = vld [vmem:[#allocation5] sm:$0xff]
        %v285 = vld [vmem:[#allocation5 + $0x8] sm:$0xff]
        %v286 = vadd.f32 %v276, %v284
        %v287 = vadd.f32 %v277, %v285
        %v288 = vadd.f32 %v278, %v284
        %v289 = vadd.f32 %v279, %v285
        %v290 = vadd.f32 %v280, %v284
        %v291 = vadd.f32 %v281, %v285
        %v292 = vadd.f32 %v282, %v284
        %v293 = vadd.f32 %v283, %v285
        %vm294 = vcmask 261120
        %v295 = vsel %vm294, %v286, 0.0
        %296 = vadd.xlane.f32.xlu0 %v295
        %v297 = vpop.xlane.xlu0 %296
        %v298 = vsel %vm294, %v287, 0.0
        %299 = vadd.xlane.f32.xlu0 %v298
        %v300 = vpop.xlane.xlu0 %299
        %v301 = vsel %vm294, %v288, 0.0
        %302 = vadd.xlane.f32.xlu0 %v301
        %v303 = vpop.xlane.xlu0 %302
        %v304 = vsel %vm294, %v289, 0.0
        %305 = vadd.xlane.f32.xlu0 %v304
        %v306 = vpop.xlane.xlu0 %305
        %v307 = vsel %vm294, %v290, 0.0
        %308 = vadd.xlane.f32.xlu0 %v307
        %v309 = vpop.xlane.xlu0 %308
        %v310 = vsel %vm294, %v291, 0.0
        %311 = vadd.xlane.f32.xlu0 %v310
        %v312 = vpop.xlane.xlu0 %311
        %v313 = vsel %vm294, %v292, 0.0
        %314 = vadd.xlane.f32.xlu0 %v313
        %v315 = vpop.xlane.xlu0 %314
        %v316 = vsel %vm294, %v293, 0.0
        %317 = vadd.xlane.f32.xlu0 %v316
        %v318 = vpop.xlane.xlu0 %317
        %v319 = vrcp.pop 32.0
        %v320 = vmul.f32 %v297, %v319
        %v321 = vmul.f32 %v300, %v319
        %v322 = vmul.f32 %v303, %v319
        %v323 = vmul.f32 %v306, %v319
        %v324 = vmul.f32 %v309, %v319
        %v325 = vmul.f32 %v312, %v319
        %v326 = vmul.f32 %v315, %v319
        %v327 = vmul.f32 %v318, %v319
        %v328 = vsub.f32 %v286, %v320
        %v329 = vsub.f32 %v287, %v321
        %v330 = vsub.f32 %v288, %v322
        %v331 = vsub.f32 %v289, %v323
        %v332 = vsub.f32 %v290, %v324
        %v333 = vsub.f32 %v291, %v325
        %v334 = vsub.f32 %v292, %v326
        %v335 = vsub.f32 %v293, %v327
        %v336 = vmul.f32 %v328, %v328
        %v337 = vmul.f32 %v329, %v329
        %v338 = vmul.f32 %v330, %v330
        %v339 = vmul.f32 %v331, %v331
        %v340 = vmul.f32 %v332, %v332
        %v341 = vmul.f32 %v333, %v333
        %v342 = vmul.f32 %v334, %v334
        %v343 = vmul.f32 %v335, %v335
        %v344 = vsel %vm294, %v336, 0.0
        %345 = vadd.xlane.f32.xlu0 %v344
        %v346 = vpop.xlane.xlu0 %345
        %v347 = vsel %vm294, %v337, 0.0
        %348 = vadd.xlane.f32.xlu0 %v347
        %v349 = vpop.xlane.xlu0 %348
        %v350 = vsel %vm294, %v338, 0.0
        %351 = vadd.xlane.f32.xlu0 %v350
        %v352 = vpop.xlane.xlu0 %351
        %v353 = vsel %vm294, %v339, 0.0
        %354 = vadd.xlane.f32.xlu0 %v353
        %v355 = vpop.xlane.xlu0 %354
        %v356 = vsel %vm294, %v340, 0.0
        %357 = vadd.xlane.f32.xlu0 %v356
        %v358 = vpop.xlane.xlu0 %357
        %v359 = vsel %vm294, %v341, 0.0
        %360 = vadd.xlane.f32.xlu0 %v359
        %v361 = vpop.xlane.xlu0 %360
        %v362 = vsel %vm294, %v342, 0.0
        %363 = vadd.xlane.f32.xlu0 %v362
        %v364 = vpop.xlane.xlu0 %363
        %v365 = vsel %vm294, %v343, 0.0
        %366 = vadd.xlane.f32.xlu0 %v365
        %v367 = vpop.xlane.xlu0 %366
        %v368 = vmul.f32 %v346, %v319
        %v369 = vmul.f32 %v349, %v319
        %v370 = vmul.f32 %v352, %v319
        %v371 = vmul.f32 %v355, %v319
        %v372 = vmul.f32 %v358, %v319
        %v373 = vmul.f32 %v361, %v319
        %v374 = vmul.f32 %v364, %v319
        %v375 = vmul.f32 %v367, %v319
        %v376 = vadd.f32 %v368, 1e-05
        %v377 = vadd.f32 %v369, 1e-05
        %v378 = vadd.f32 %v370, 1e-05
        %v379 = vadd.f32 %v371, 1e-05
        %v380 = vadd.f32 %v372, 1e-05
        %v381 = vadd.f32 %v373, 1e-05
        %v382 = vadd.f32 %v374, 1e-05
        %v383 = vadd.f32 %v375, 1e-05
        %v384 = vrsqrt.pop %v376
        %v385 = vrsqrt.pop %v377
        %v386 = vrsqrt.pop %v378
        %v387 = vrsqrt.pop %v379
        %v388 = vrsqrt.pop %v380
        %v389 = vrsqrt.pop %v381
        %v390 = vrsqrt.pop %v382
        %v391 = vrsqrt.pop %v383
        %v392 = vmul.f32 %v328, %v384
        %v393 = vmul.f32 %v329, %v385
        %v394 = vmul.f32 %v330, %v386
        %v395 = vmul.f32 %v331, %v387
        %v396 = vmul.f32 %v332, %v388
        %v397 = vmul.f32 %v333, %v389
        %v398 = vmul.f32 %v334, %v390
        %v399 = vmul.f32 %v335, %v391
        %v400 = vld [vmem:[%s3] sm:$0x1]
        %v402 = vlaneseq
        %v403 = vshrl.u32 %v402, 7
        %v404 = vsub.s32 0, %v403
        %v405 = vrot.slane %v400, %v404
        %v407 = vmul.f32 %v392, %v405
        %v408 = vmul.f32 %v393, %v405
        %v409 = vmul.f32 %v394, %v405
        %v410 = vmul.f32 %v395, %v405
        %v411 = vmul.f32 %v396, %v405
        %v412 = vmul.f32 %v397, %v405
        %v413 = vmul.f32 %v398, %v405
        %v414 = vmul.f32 %v399, %v405
        %v415 = vld [vmem:[%s4] sm:$0x1]
        %v417 = vlaneseq
        %v418 = vshrl.u32 %v417, 7
        %v419 = vsub.s32 0, %v418
        %v420 = vrot.slane %v415, %v419
        %v422 = vadd.f32 %v407, %v420
        %v423 = vadd.f32 %v408, %v420
        %v424 = vadd.f32 %v409, %v420
        %v425 = vadd.f32 %v410, %v420
        %v426 = vadd.f32 %v411, %v420
        %v427 = vadd.f32 %v412, %v420
        %v428 = vadd.f32 %v413, %v420
        %v429 = vadd.f32 %v414, %v420
        %v430 = vpack.c.bf16 %v423, %v422
        %v431 = vpack.c.bf16 %v425, %v424
        %v432 = vpack.c.bf16 %v427, %v426
        %v433 = vpack.c.bf16 %v429, %v428
        %v434 = vld [vmem:[#allocation7] sm:$0xf]
        %v435 = vld [vmem:[#allocation7 + $0x4] sm:$0xf]
        %v436 = vld [vmem:[#allocation7 + $0x8] sm:$0xf]
        %v437 = vld [vmem:[#allocation7 + $0xc] sm:$0xf]
        %v442 = vunpack.c.l.b16 %v434
        %v443 = vunpack.c.l.b16 %v435
        %v444 = vunpack.c.l.b16 %v436
        %v445 = vunpack.c.l.b16 %v437
        %v446 = vpack.c.b16 %v443, %v442
        %v447 = vpack.c.b16 %v445, %v444
        %v451 = vsel %vm294, %v430, 0
        %v454 = vsel %vm294, %v431, 0
        %v457 = vsel %vm294, %v432, 0
        %v460 = vsel %vm294, %v433, 0
        %462 = vmatprep.subr.bf16.mxu0 0
        %463 = vmatpush1.bf16.msra.mxu0 0
        %464 = vmatprep.subr.bf16.mxu0 0
        %465 = vmatpush1.bf16.msra.mxu0 0
        %466 = vmatprep.subr.bf16.mxu0 0
        %467 = vmatpush1.bf16.msra.mxu0 0
        %468 = vmatprep.subr.bf16.mxu0 0
        %469 = vmatpush1.bf16.msra.mxu0 0
        %470 = vmatprep.subr.bf16.mxu0 0
        %471 = vmatpush1.bf16.msra.mxu0 0
        %472 = vmatprep.subr.bf16.mxu0 0
        %473 = vmatpush1.bf16.msra.mxu0 0
        %474 = vmatprep.subr.bf16.mxu0 0
        %475 = vmatpush1.bf16.msra.mxu0 %v447
        %476 = vmatprep.subr.bf16.mxu0 0
        %477 = vmatpush1.bf16.msra.mxu0 %v446
        %478 = vmatprep.subr.bf16.mxu0 0
        %479 = vmatpush2.bf16.msra.mxu0 0
        %480 = vmatprep.subr.bf16.mxu0 0
        %481 = vmatpush2.bf16.msra.mxu0 0
        %482 = vmatprep.subr.bf16.mxu0 0
        %483 = vmatpush2.bf16.msra.mxu0 0
        %484 = vmatprep.subr.bf16.mxu0 0
        %485 = vmatpush2.bf16.msra.mxu0 0
        %486 = vmatprep.subr.bf16.mxu0 0
        %487 = vmatpush2.bf16.msra.mxu0 0
        %488 = vmatprep.subr.bf16.mxu0 0
        %489 = vmatpush2.bf16.msra.mxu0 0
        %490 = vmatprep.subr.bf16.mxu0 0
        %491 = vmatpush2.bf16.msra.mxu0 0
        %492 = vmatprep.subr.bf16.mxu0 0
        %493 = vmatpush2.bf16.msra.mxu0 0
        %494 = vmatprep.mubr.bf16.mxu0 0
        %495 = vmatmul.mubr.bf16.gmra.mxu0 %v451
        %v496 = vpop.f32.mrf.mxu0
        %v497 = vadd.f32 0.0, %v496
        %v498 = vpop.f32.mrf.mxu0
        %v499 = vpop.f32.mrf.mxu0
        %v500 = vadd.f32 0.0, %v499
        %v501 = vpop.f32.mrf.mxu0
        %502 = vmatprep.mubr.bf16.mxu0 0
        %503 = vmatmul.mubr.bf16.gmra.mxu0 %v454
        %v504 = vpop.f32.mrf.mxu0
        %v505 = vadd.f32 0.0, %v504
        %v506 = vpop.f32.mrf.mxu0
        %v507 = vpop.f32.mrf.mxu0
        %v508 = vadd.f32 0.0, %v507
        %v509 = vpop.f32.mrf.mxu0
        %510 = vmatprep.mubr.bf16.mxu0 0
        %511 = vmatmul.mubr.bf16.gmra.mxu0 %v457
        %v512 = vpop.f32.mrf.mxu0
        %v513 = vadd.f32 0.0, %v512
        %v514 = vpop.f32.mrf.mxu0
        %v515 = vpop.f32.mrf.mxu0
        %v516 = vadd.f32 0.0, %v515
        %v517 = vpop.f32.mrf.mxu0
        %518 = vmatprep.mubr.bf16.mxu0 0
        %519 = vmatmul.mubr.bf16.gmra.mxu0 %v460
        %v520 = vpop.f32.mrf.mxu0
        %v521 = vadd.f32 0.0, %v520
        %v522 = vpop.f32.mrf.mxu0
        %v523 = vpop.f32.mrf.mxu0
        %v524 = vadd.f32 0.0, %v523
        %v525 = vpop.f32.mrf.mxu0
        %526 = vdwg.mxu0
        %527 = vxpose.xlu0.c.b16.start [1/8] %v430, 128
        %528 = vxpose.xlu0.c.b16.cont [2/8] 0, 128
        %529 = vxpose.xlu0.c.b16.cont [3/8] 0, 128
        %530 = vxpose.xlu0.c.b16.cont [4/8] 0, 128
        %531 = vxpose.xlu0.c.b16.cont [5/8] 0, 128
        %532 = vxpose.xlu0.c.b16.cont [6/8] 0, 128
        %533 = vxpose.xlu0.c.b16.cont [7/8] 0, 128
        %534 = vxpose.xlu0.c.b16.end [8/8] 0, 128
        %v535 = vpop.trf.xlu0
        %v536 = vpop.trf.xlu0
        %v537 = vpop.trf.xlu0
        %v538 = vpop.trf.xlu0
        %v539 = vpop.trf.xlu0
        %v540 = vpop.trf.xlu0
        %v541 = vpop.trf.xlu0
        %v542 = vpop.trf.xlu0
        %vm543 = vcmask 130048
        %v545 = vsel %vm543, %v535, 0
        %v548 = vsel %vm543, %v536, 0
        %550 = vmatprep.subr.bf16.mxu0 0
        %551 = vmatpush1.bf16.msra.mxu0 0
        %552 = vmatprep.subr.bf16.mxu0 0
        %553 = vmatpush1.bf16.msra.mxu0 0
        %554 = vmatprep.subr.bf16.mxu0 0
        %555 = vmatpush1.bf16.msra.mxu0 0
        %556 = vmatprep.subr.bf16.mxu0 0
        %557 = vmatpush1.bf16.msra.mxu0 0
        %558 = vmatprep.subr.bf16.mxu0 0
        %559 = vmatpush1.bf16.msra.mxu0 0
        %560 = vmatprep.subr.bf16.mxu0 0
        %561 = vmatpush1.bf16.msra.mxu0 0
        %562 = vmatprep.subr.bf16.mxu0 0
        %563 = vmatpush1.bf16.msra.mxu0 0
        %564 = vmatprep.subr.bf16.mxu0 0
        %565 = vmatpush1.bf16.msra.mxu0 %v430
        %566 = vmatprep.subr.bf16.mxu0 0
        %567 = vmatpush2.bf16.msra.mxu0 0
        %568 = vmatprep.subr.bf16.mxu0 0
        %569 = vmatpush2.bf16.msra.mxu0 0
        %570 = vmatprep.subr.bf16.mxu0 0
        %571 = vmatpush2.bf16.msra.mxu0 0
        %572 = vmatprep.subr.bf16.mxu0 0
        %573 = vmatpush2.bf16.msra.mxu0 0
        %574 = vmatprep.subr.bf16.mxu0 0
        %575 = vmatpush2.bf16.msra.mxu0 0
        %576 = vmatprep.subr.bf16.mxu0 0
        %577 = vmatpush2.bf16.msra.mxu0 0
        %578 = vmatprep.subr.bf16.mxu0 0
        %579 = vmatpush2.bf16.msra.mxu0 0
        %580 = vmatprep.subr.bf16.mxu0 0
        %581 = vmatpush2.bf16.msra.mxu0 0
        %582 = vmatprep.mubr.bf16.mxu0 0
        %583 = vmatmul.mubr.bf16.gmra.mxu0 %v545
        %v584 = vpop.f32.mrf.mxu0
        %v585 = vadd.f32 0.0, %v584
        %v586 = vpop.f32.mrf.mxu0
        %v587 = vpop.f32.mrf.mxu0
        %v588 = vadd.f32 0.0, %v587
        %v589 = vpop.f32.mrf.mxu0
        %590 = vmatprep.mubr.bf16.mxu0 0
        %591 = vmatmul.mubr.bf16.gmra.mxu0 %v548
        %v592 = vpop.f32.mrf.mxu0
        %v593 = vadd.f32 0.0, %v592
        %v594 = vpop.f32.mrf.mxu0
        %v595 = vpop.f32.mrf.mxu0
        %v596 = vadd.f32 0.0, %v595
        %v597 = vpop.f32.mrf.mxu0
        %598 = vdwg.mxu0
        %599 = vxpose.xlu0.c.b16.start [1/8] %v431, 128
        %600 = vxpose.xlu0.c.b16.cont [2/8] 0, 128
        %601 = vxpose.xlu0.c.b16.cont [3/8] 0, 128
        %602 = vxpose.xlu0.c.b16.cont [4/8] 0, 128
        %603 = vxpose.xlu0.c.b16.cont [5/8] 0, 128
        %604 = vxpose.xlu0.c.b16.cont [6/8] 0, 128
        %605 = vxpose.xlu0.c.b16.cont [7/8] 0, 128
        %606 = vxpose.xlu0.c.b16.end [8/8] 0, 128
        %v607 = vpop.trf.xlu0
        %v608 = vpop.trf.xlu0
        %v609 = vpop.trf.xlu0
        %v610 = vpop.trf.xlu0
        %v611 = vpop.trf.xlu0
        %v612 = vpop.trf.xlu0
        %v613 = vpop.trf.xlu0
        %v614 = vpop.trf.xlu0
        %v616 = vsel %vm543, %v607, 0
        %v619 = vsel %vm543, %v608, 0
        %621 = vmatprep.subr.bf16.mxu0 0
        %622 = vmatpush1.bf16.msra.mxu0 0
        %623 = vmatprep.subr.bf16.mxu0 0
        %624 = vmatpush1.bf16.msra.mxu0 0
        %625 = vmatprep.subr.bf16.mxu0 0
        %626 = vmatpush1.bf16.msra.mxu0 0
        %627 = vmatprep.subr.bf16.mxu0 0
        %628 = vmatpush1.bf16.msra.mxu0 0
        %629 = vmatprep.subr.bf16.mxu0 0
        %630 = vmatpush1.bf16.msra.mxu0 0
        %631 = vmatprep.subr.bf16.mxu0 0
        %632 = vmatpush1.bf16.msra.mxu0 0
        %633 = vmatprep.subr.bf16.mxu0 0
        %634 = vmatpush1.bf16.msra.mxu0 0
        %635 = vmatprep.subr.bf16.mxu0 0
        %636 = vmatpush1.bf16.msra.mxu0 %v431
        %637 = vmatprep.subr.bf16.mxu0 0
        %638 = vmatpush2.bf16.msra.mxu0 0
        %639 = vmatprep.subr.bf16.mxu0 0
        %640 = vmatpush2.bf16.msra.mxu0 0
        %641 = vmatprep.subr.bf16.mxu0 0
        %642 = vmatpush2.bf16.msra.mxu0 0
        %643 = vmatprep.subr.bf16.mxu0 0
        %644 = vmatpush2.bf16.msra.mxu0 0
        %645 = vmatprep.subr.bf16.mxu0 0
        %646 = vmatpush2.bf16.msra.mxu0 0
        %647 = vmatprep.subr.bf16.mxu0 0
        %648 = vmatpush2.bf16.msra.mxu0 0
        %649 = vmatprep.subr.bf16.mxu0 0
        %650 = vmatpush2.bf16.msra.mxu0 0
        %651 = vmatprep.subr.bf16.mxu0 0
        %652 = vmatpush2.bf16.msra.mxu0 0
        %653 = vmatprep.mubr.bf16.mxu0 0
        %654 = vmatmul.mubr.bf16.gmra.mxu0 %v616
        %v655 = vpop.f32.mrf.mxu0
        %v656 = vadd.f32 0.0, %v655
        %v657 = vpop.f32.mrf.mxu0
        %v658 = vpop.f32.mrf.mxu0
        %v659 = vadd.f32 0.0, %v658
        %v660 = vpop.f32.mrf.mxu0
        %661 = vmatprep.mubr.bf16.mxu0 0
        %662 = vmatmul.mubr.bf16.gmra.mxu0 %v619
        %v663 = vpop.f32.mrf.mxu0
        %v664 = vadd.f32 0.0, %v663
        %v665 = vpop.f32.mrf.mxu0
        %v666 = vpop.f32.mrf.mxu0
        %v667 = vadd.f32 0.0, %v666
        %v668 = vpop.f32.mrf.mxu0
        %669 = vdwg.mxu0
        %670 = vxpose.xlu0.c.b16.start [1/8] %v432, 128
        %671 = vxpose.xlu0.c.b16.cont [2/8] 0, 128
        %672 = vxpose.xlu0.c.b16.cont [3/8] 0, 128
        %673 = vxpose.xlu0.c.b16.cont [4/8] 0, 128
        %674 = vxpose.xlu0.c.b16.cont [5/8] 0, 128
        %675 = vxpose.xlu0.c.b16.cont [6/8] 0, 128
        %676 = vxpose.xlu0.c.b16.cont [7/8] 0, 128
        %677 = vxpose.xlu0.c.b16.end [8/8] 0, 128
        %v678 = vpop.trf.xlu0
        %v679 = vpop.trf.xlu0
        %v680 = vpop.trf.xlu0
        %v681 = vpop.trf.xlu0
        %v682 = vpop.trf.xlu0
        %v683 = vpop.trf.xlu0
        %v684 = vpop.trf.xlu0
        %v685 = vpop.trf.xlu0
        %v687 = vsel %vm543, %v678, 0
        %v690 = vsel %vm543, %v679, 0
        %692 = vmatprep.subr.bf16.mxu0 0
        %693 = vmatpush1.bf16.msra.mxu0 0
        %694 = vmatprep.subr.bf16.mxu0 0
        %695 = vmatpush1.bf16.msra.mxu0 0
        %696 = vmatprep.subr.bf16.mxu0 0
        %697 = vmatpush1.bf16.msra.mxu0 0
        %698 = vmatprep.subr.bf16.mxu0 0
        %699 = vmatpush1.bf16.msra.mxu0 0
        %700 = vmatprep.subr.bf16.mxu0 0
        %701 = vmatpush1.bf16.msra.mxu0 0
        %702 = vmatprep.subr.bf16.mxu0 0
        %703 = vmatpush1.bf16.msra.mxu0 0
        %704 = vmatprep.subr.bf16.mxu0 0
        %705 = vmatpush1.bf16.msra.mxu0 0
        %706 = vmatprep.subr.bf16.mxu0 0
        %707 = vmatpush1.bf16.msra.mxu0 %v432
        %708 = vmatprep.subr.bf16.mxu0 0
        %709 = vmatpush2.bf16.msra.mxu0 0
        %710 = vmatprep.subr.bf16.mxu0 0
        %711 = vmatpush2.bf16.msra.mxu0 0
        %712 = vmatprep.subr.bf16.mxu0 0
        %713 = vmatpush2.bf16.msra.mxu0 0
        %714 = vmatprep.subr.bf16.mxu0 0
        %715 = vmatpush2.bf16.msra.mxu0 0
        %716 = vmatprep.subr.bf16.mxu0 0
        %717 = vmatpush2.bf16.msra.mxu0 0
        %718 = vmatprep.subr.bf16.mxu0 0
        %719 = vmatpush2.bf16.msra.mxu0 0
        %720 = vmatprep.subr.bf16.mxu0 0
        %721 = vmatpush2.bf16.msra.mxu0 0
        %722 = vmatprep.subr.bf16.mxu0 0
        %723 = vmatpush2.bf16.msra.mxu0 0
        %724 = vmatprep.mubr.bf16.mxu0 0
        %725 = vmatmul.mubr.bf16.gmra.mxu0 %v687
        %v726 = vpop.f32.mrf.mxu0
        %v727 = vadd.f32 0.0, %v726
        %v728 = vpop.f32.mrf.mxu0
        %v729 = vpop.f32.mrf.mxu0
        %v730 = vadd.f32 0.0, %v729
        %v731 = vpop.f32.mrf.mxu0
        %732 = vmatprep.mubr.bf16.mxu0 0
        %733 = vmatmul.mubr.bf16.gmra.mxu0 %v690
        %v734 = vpop.f32.mrf.mxu0
        %v735 = vadd.f32 0.0, %v734
        %v736 = vpop.f32.mrf.mxu0
        %v737 = vpop.f32.mrf.mxu0
        %v738 = vadd.f32 0.0, %v737
        %v739 = vpop.f32.mrf.mxu0
        %740 = vdwg.mxu0
        %741 = vxpose.xlu0.c.b16.start [1/8] %v433, 128
        %742 = vxpose.xlu0.c.b16.cont [2/8] 0, 128
        %743 = vxpose.xlu0.c.b16.cont [3/8] 0, 128
        %744 = vxpose.xlu0.c.b16.cont [4/8] 0, 128
        %745 = vxpose.xlu0.c.b16.cont [5/8] 0, 128
        %746 = vxpose.xlu0.c.b16.cont [6/8] 0, 128
        %747 = vxpose.xlu0.c.b16.cont [7/8] 0, 128
        %748 = vxpose.xlu0.c.b16.end [8/8] 0, 128
        %v749 = vpop.trf.xlu0
        %v750 = vpop.trf.xlu0
        %v751 = vpop.trf.xlu0
        %v752 = vpop.trf.xlu0
        %v753 = vpop.trf.xlu0
        %v754 = vpop.trf.xlu0
        %v755 = vpop.trf.xlu0
        %v756 = vpop.trf.xlu0
        %v758 = vsel %vm543, %v749, 0
        %v761 = vsel %vm543, %v750, 0
        %763 = vmatprep.subr.bf16.mxu0 0
        %764 = vmatpush1.bf16.msra.mxu0 0
        %765 = vmatprep.subr.bf16.mxu0 0
        %766 = vmatpush1.bf16.msra.mxu0 0
        %767 = vmatprep.subr.bf16.mxu0 0
        %768 = vmatpush1.bf16.msra.mxu0 0
        %769 = vmatprep.subr.bf16.mxu0 0
        %770 = vmatpush1.bf16.msra.mxu0 0
        %771 = vmatprep.subr.bf16.mxu0 0
        %772 = vmatpush1.bf16.msra.mxu0 0
        %773 = vmatprep.subr.bf16.mxu0 0
        %774 = vmatpush1.bf16.msra.mxu0 0
        %775 = vmatprep.subr.bf16.mxu0 0
        %776 = vmatpush1.bf16.msra.mxu0 0
        %777 = vmatprep.subr.bf16.mxu0 0
        %778 = vmatpush1.bf16.msra.mxu0 %v433
        %779 = vmatprep.subr.bf16.mxu0 0
        %780 = vmatpush2.bf16.msra.mxu0 0
        %781 = vmatprep.subr.bf16.mxu0 0
        %782 = vmatpush2.bf16.msra.mxu0 0
        %783 = vmatprep.subr.bf16.mxu0 0
        %784 = vmatpush2.bf16.msra.mxu0 0
        %785 = vmatprep.subr.bf16.mxu0 0
        %786 = vmatpush2.bf16.msra.mxu0 0
        %787 = vmatprep.subr.bf16.mxu0 0
        %788 = vmatpush2.bf16.msra.mxu0 0
        %789 = vmatprep.subr.bf16.mxu0 0
        %790 = vmatpush2.bf16.msra.mxu0 0
        %791 = vmatprep.subr.bf16.mxu0 0
        %792 = vmatpush2.bf16.msra.mxu0 0
        %793 = vmatprep.subr.bf16.mxu0 0
        %794 = vmatpush2.bf16.msra.mxu0 0
        %795 = vmatprep.mubr.bf16.mxu0 0
        %796 = vmatmul.mubr.bf16.gmra.mxu0 %v758
        %v797 = vpop.f32.mrf.mxu0
        %v798 = vadd.f32 0.0, %v797
        %v799 = vpop.f32.mrf.mxu0
        %v800 = vpop.f32.mrf.mxu0
        %v801 = vadd.f32 0.0, %v800
        %v802 = vpop.f32.mrf.mxu0
        %803 = vmatprep.mubr.bf16.mxu0 0
        %804 = vmatmul.mubr.bf16.gmra.mxu0 %v761
        %v805 = vpop.f32.mrf.mxu0
        %v806 = vadd.f32 0.0, %v805
        %v807 = vpop.f32.mrf.mxu0
        %v808 = vpop.f32.mrf.mxu0
        %v809 = vadd.f32 0.0, %v808
        %v810 = vpop.f32.mrf.mxu0
        %811 = vdwg.mxu0
        %v812 = vpack.c.bf16 %v500, %v497
        %v813 = vpack.c.bf16 %v508, %v505
        %v814 = vpack.c.bf16 %v516, %v513
        %v815 = vpack.c.bf16 %v524, %v521
        %v816 = vpack.c.bf16 %v588, %v585
        %v817 = vpack.c.bf16 %v596, %v593
        %v818 = vpack.c.bf16 %v659, %v656
        %v819 = vpack.c.bf16 %v667, %v664
        %v820 = vpack.c.bf16 %v730, %v727
        %v821 = vpack.c.bf16 %v738, %v735
        %v822 = vpack.c.bf16 %v801, %v798
        %v823 = vpack.c.bf16 %v809, %v806
        %v825 = vsel %vm294, %v812, 0
        %827 = vmatprep.subr.bf16.mxu0 0
        %828 = vmatpush1.bf16.msra.mxu0 0
        %829 = vmatprep.subr.bf16.mxu0 0
        %830 = vmatpush1.bf16.msra.mxu0 0
        %831 = vmatprep.subr.bf16.mxu0 0
        %832 = vmatpush1.bf16.msra.mxu0 0
        %833 = vmatprep.subr.bf16.mxu0 0
        %834 = vmatpush1.bf16.msra.mxu0 0
        %835 = vmatprep.subr.bf16.mxu0 0
        %836 = vmatpush1.bf16.msra.mxu0 0
        %837 = vmatprep.subr.bf16.mxu0 0
        %838 = vmatpush1.bf16.msra.mxu0 0
        %839 = vmatprep.subr.bf16.mxu0 0
        %840 = vmatpush1.bf16.msra.mxu0 %v817
        %841 = vmatprep.subr.bf16.mxu0 0
        %842 = vmatpush1.bf16.msra.mxu0 %v816
        %843 = vmatprep.subr.bf16.mxu0 0
        %844 = vmatpush2.bf16.msra.mxu0 0
        %845 = vmatprep.subr.bf16.mxu0 0
        %846 = vmatpush2.bf16.msra.mxu0 0
        %847 = vmatprep.subr.bf16.mxu0 0
        %848 = vmatpush2.bf16.msra.mxu0 0
        %849 = vmatprep.subr.bf16.mxu0 0
        %850 = vmatpush2.bf16.msra.mxu0 0
        %851 = vmatprep.subr.bf16.mxu0 0
        %852 = vmatpush2.bf16.msra.mxu0 0
        %853 = vmatprep.subr.bf16.mxu0 0
        %854 = vmatpush2.bf16.msra.mxu0 0
        %855 = vmatprep.subr.bf16.mxu0 0
        %856 = vmatpush2.bf16.msra.mxu0 0
        %857 = vmatprep.subr.bf16.mxu0 0
        %858 = vmatpush2.bf16.msra.mxu0 0
        %859 = vmatprep.mubr.bf16.mxu0 0
        %860 = vmatmul.mubr.bf16.gmra.mxu0 %v825
        %v861 = vpop.f32.mrf.mxu0
        %v862 = vadd.f32 0.0, %v861
        %v863 = vpop.f32.mrf.mxu0
        %v864 = vpop.f32.mrf.mxu0
        %v865 = vadd.f32 0.0, %v864
        %v866 = vpop.f32.mrf.mxu0
        %867 = vdwg.mxu0
        %v869 = vsel %vm294, %v813, 0
        %871 = vmatprep.subr.bf16.mxu0 0
        %872 = vmatpush1.bf16.msra.mxu0 0
        %873 = vmatprep.subr.bf16.mxu0 0
        %874 = vmatpush1.bf16.msra.mxu0 0
        %875 = vmatprep.subr.bf16.mxu0 0
        %876 = vmatpush1.bf16.msra.mxu0 0
        %877 = vmatprep.subr.bf16.mxu0 0
        %878 = vmatpush1.bf16.msra.mxu0 0
        %879 = vmatprep.subr.bf16.mxu0 0
        %880 = vmatpush1.bf16.msra.mxu0 0
        %881 = vmatprep.subr.bf16.mxu0 0
        %882 = vmatpush1.bf16.msra.mxu0 0
        %883 = vmatprep.subr.bf16.mxu0 0
        %884 = vmatpush1.bf16.msra.mxu0 %v819
        %885 = vmatprep.subr.bf16.mxu0 0
        %886 = vmatpush1.bf16.msra.mxu0 %v818
        %887 = vmatprep.subr.bf16.mxu0 0
        %888 = vmatpush2.bf16.msra.mxu0 0
        %889 = vmatprep.subr.bf16.mxu0 0
        %890 = vmatpush2.bf16.msra.mxu0 0
        %891 = vmatprep.subr.bf16.mxu0 0
        %892 = vmatpush2.bf16.msra.mxu0 0
        %893 = vmatprep.subr.bf16.mxu0 0
        %894 = vmatpush2.bf16.msra.mxu0 0
        %895 = vmatprep.subr.bf16.mxu0 0
        %896 = vmatpush2.bf16.msra.mxu0 0
        %897 = vmatprep.subr.bf16.mxu0 0
        %898 = vmatpush2.bf16.msra.mxu0 0
        %899 = vmatprep.subr.bf16.mxu0 0
        %900 = vmatpush2.bf16.msra.mxu0 0
        %901 = vmatprep.subr.bf16.mxu0 0
        %902 = vmatpush2.bf16.msra.mxu0 0
        %903 = vmatprep.mubr.bf16.mxu0 0
        %904 = vmatmul.mubr.bf16.gmra.mxu0 %v869
        %v905 = vpop.f32.mrf.mxu0
        %v906 = vadd.f32 0.0, %v905
        %v907 = vpop.f32.mrf.mxu0
        %v908 = vpop.f32.mrf.mxu0
        %v909 = vadd.f32 0.0, %v908
        %v910 = vpop.f32.mrf.mxu0
        %911 = vdwg.mxu0
        %v913 = vsel %vm294, %v814, 0
        %915 = vmatprep.subr.bf16.mxu0 0
        %916 = vmatpush1.bf16.msra.mxu0 0
        %917 = vmatprep.subr.bf16.mxu0 0
        %918 = vmatpush1.bf16.msra.mxu0 0
        %919 = vmatprep.subr.bf16.mxu0 0
        %920 = vmatpush1.bf16.msra.mxu0 0
        %921 = vmatprep.subr.bf16.mxu0 0
        %922 = vmatpush1.bf16.msra.mxu0 0
        %923 = vmatprep.subr.bf16.mxu0 0
        %924 = vmatpush1.bf16.msra.mxu0 0
        %925 = vmatprep.subr.bf16.mxu0 0
        %926 = vmatpush1.bf16.msra.mxu0 0
        %927 = vmatprep.subr.bf16.mxu0 0
        %928 = vmatpush1.bf16.msra.mxu0 %v821
        %929 = vmatprep.subr.bf16.mxu0 0
        %930 = vmatpush1.bf16.msra.mxu0 %v820
        %931 = vmatprep.subr.bf16.mxu0 0
        %932 = vmatpush2.bf16.msra.mxu0 0
        %933 = vmatprep.subr.bf16.mxu0 0
        %934 = vmatpush2.bf16.msra.mxu0 0
        %935 = vmatprep.subr.bf16.mxu0 0
        %936 = vmatpush2.bf16.msra.mxu0 0
        %937 = vmatprep.subr.bf16.mxu0 0
        %938 = vmatpush2.bf16.msra.mxu0 0
        %939 = vmatprep.subr.bf16.mxu0 0
        %940 = vmatpush2.bf16.msra.mxu0 0
        %941 = vmatprep.subr.bf16.mxu0 0
        %942 = vmatpush2.bf16.msra.mxu0 0
        %943 = vmatprep.subr.bf16.mxu0 0
        %944 = vmatpush2.bf16.msra.mxu0 0
        %945 = vmatprep.subr.bf16.mxu0 0
        %946 = vmatpush2.bf16.msra.mxu0 0
        %947 = vmatprep.mubr.bf16.mxu0 0
        %948 = vmatmul.mubr.bf16.gmra.mxu0 %v913
        %v949 = vpop.f32.mrf.mxu0
        %v950 = vadd.f32 0.0, %v949
        %v951 = vpop.f32.mrf.mxu0
        %v952 = vpop.f32.mrf.mxu0
        %v953 = vadd.f32 0.0, %v952
        %v954 = vpop.f32.mrf.mxu0
        %955 = vdwg.mxu0
        %v957 = vsel %vm294, %v815, 0
        %959 = vmatprep.subr.bf16.mxu0 0
        %960 = vmatpush1.bf16.msra.mxu0 0
        %961 = vmatprep.subr.bf16.mxu0 0
        %962 = vmatpush1.bf16.msra.mxu0 0
        %963 = vmatprep.subr.bf16.mxu0 0
        %964 = vmatpush1.bf16.msra.mxu0 0
        %965 = vmatprep.subr.bf16.mxu0 0
        %966 = vmatpush1.bf16.msra.mxu0 0
        %967 = vmatprep.subr.bf16.mxu0 0
        %968 = vmatpush1.bf16.msra.mxu0 0
        %969 = vmatprep.subr.bf16.mxu0 0
        %970 = vmatpush1.bf16.msra.mxu0 0
        %971 = vmatprep.subr.bf16.mxu0 0
        %972 = vmatpush1.bf16.msra.mxu0 %v823
        %973 = vmatprep.subr.bf16.mxu0 0
        %974 = vmatpush1.bf16.msra.mxu0 %v822
        %975 = vmatprep.subr.bf16.mxu0 0
        %976 = vmatpush2.bf16.msra.mxu0 0
        %977 = vmatprep.subr.bf16.mxu0 0
        %978 = vmatpush2.bf16.msra.mxu0 0
        %979 = vmatprep.subr.bf16.mxu0 0
        %980 = vmatpush2.bf16.msra.mxu0 0
        %981 = vmatprep.subr.bf16.mxu0 0
        %982 = vmatpush2.bf16.msra.mxu0 0
        %983 = vmatprep.subr.bf16.mxu0 0
        %984 = vmatpush2.bf16.msra.mxu0 0
        %985 = vmatprep.subr.bf16.mxu0 0
        %986 = vmatpush2.bf16.msra.mxu0 0
        %987 = vmatprep.subr.bf16.mxu0 0
        %988 = vmatpush2.bf16.msra.mxu0 0
        %989 = vmatprep.subr.bf16.mxu0 0
        %990 = vmatpush2.bf16.msra.mxu0 0
        %991 = vmatprep.mubr.bf16.mxu0 0
        %992 = vmatmul.mubr.bf16.gmra.mxu0 %v957
        %v993 = vpop.f32.mrf.mxu0
        %v994 = vadd.f32 0.0, %v993
        %v995 = vpop.f32.mrf.mxu0
        %v996 = vpop.f32.mrf.mxu0
        %v997 = vadd.f32 0.0, %v996
        %v998 = vpop.f32.mrf.mxu0
        %999 = vdwg.mxu0
        %1000 = vst.msk [vmem:[%s272] sm:$0xff] %vm294, %v862
        %1001 = vst.msk [vmem:[%s272 + $0x8] sm:$0xff] %vm294, %v865
        %1002 = vst.msk [vmem:[%s272 + $0x10] sm:$0xff] %vm294, %v906
        %1003 = vst.msk [vmem:[%s272 + $0x18] sm:$0xff] %vm294, %v909
        %1004 = vst.msk [vmem:[%s272 + $0x20] sm:$0xff] %vm294, %v950
        %1005 = vst.msk [vmem:[%s272 + $0x28] sm:$0xff] %vm294, %v953
        %1006 = vst.msk [vmem:[%s272 + $0x30] sm:$0xff] %vm294, %v994
        %1007 = vst.msk [vmem:[%s272 + $0x38] sm:$0xff] %vm294, %v997
        %s1008 = sand.u32 %s141, 1
        %s1009 = scalar_lea.sflag [#allocation4], %s1008
        %s1010 = sand.u32 %s141, 1
        %s1011 = smul.addr %s1010, 64
        %s1012 = scalar_lea.vmem [#allocation8], %s1011
        // Predicated region
        $region53: #{tpu_custom_call.1} parent=39 // pred_check
          %p1013 = pneg %p151
        $region54: #{tpu_custom_call.1} parent=39 // pred_check_branch
          %1015 = sbr.rel (%p1013) target = $region56
        $region55: #{tpu_custom_call.1} parent=39 // pred_region
          %s1016 = smul.u32 4, %s23
          %s1018 = ssub.s32 1024, 1024
          %1019 = vsyncadd %s1009, %s1018
          %s1020 = smul.addr %s1016, 2
          %s1021 = smul.addr %s1020, 128
          %s1022 = scalar_lea.hbm %s5, %s1021
          %s1023 = sshll.u32 %s1012, 4
          %s1024 = int_to_ptr.vmem [resolvable:$true] %s1023
          %1029 = dma.vmem_to_hbm [thread:$0]  %s1024, 1024, %s1022, %s1009, 128, 128, 8
        $region56: #{tpu_custom_call.1} parent=39 // pred_fallthru
          _
      $region40: #{tpu_custom_call.1} parent=5 // pred_fallthru
        _
      %p1030 = scmp.le.s32.totalorder 2, %s18
      // Predicated region
      $region57: #{tpu_custom_call.1} parent=5 // pred_check
        %p1031 = pneg %p1030
      $region58: #{tpu_custom_call.1} parent=5 // pred_check_branch
        %1033 = sbr.rel (%p1031) target = $region60
      $region59: #{tpu_custom_call.1} parent=5 // pred_region
        %s1034 = ssub.s32 %s18, 2
        // Predicated region
        $region61: #{tpu_custom_call.1} parent=59 // pred_check
          %p1035 = pneg %p157
        $region62: #{tpu_custom_call.1} parent=59 // pred_check_branch
          %1037 = sbr.rel (%p1035) target = $region64
        $region63: #{tpu_custom_call.1} parent=59 // pred_region
          %s1038 = sand.u32 %s142, 1
          %s1039 = scalar_lea.sflag [#allocation4], %s1038
          %s1040 = sand.u32 %s142, 1
          %s1041 = smul.addr %s1040, 64
          %s1042 = scalar_lea.vmem [#allocation8], %s1041
          %1043 = dma.done %s1039, 1024
        $region64: #{tpu_custom_call.1} parent=59 // pred_fallthru
          _
      $region60: #{tpu_custom_call.1} parent=5 // pred_fallthru
        _
    $region6: #{tpu_custom_call.1} parent=1 // loop_footer
      %s22 = sadd.s32 1, %s18
    $region7: #{tpu_custom_call.1} parent=1 // loop_footer_branch
      %17 = sbr.rel target = $region3
    $region8: #{tpu_custom_call.1} parent=1 // loop_exit
      _
    %1044 = vsyncpa [#allocation3], 1
    %s1045 = scalar_lea.sflag [#allocation3], 1
    %1046 = vsyncpa %s1045, 1
    %1047 = vsyncpa [#allocation6], 1
    %1048 = vsyncpa [#allocation4], 1
    %s1049 = scalar_lea.sflag [#allocation4], 1
    %1050 = vsyncpa %s1049, 1

</llo_original>
